<compile_context>
chip_gen: v5e
topology: v5e:2x2
jax: 0.10.0
libtpu: 0.0.40
codegen_flags: <defaults>
</compile_context>

<pallas_src>
import functools

import jax
import jax.numpy as jnp
from jax import lax
from jax.experimental import pallas as pl
from jax.experimental.pallas import tpu as pltpu


# ----------------------------------------------------------------------------
# Fused kernel: projection heads (MOL, KG) + cosine-sim contrastive loss
# ----------------------------------------------------------------------------
def _contrast_kernel(s1_ref, s2_ref, q1_ref, q2_ref, pos_ref,
                     w1m_ref, b1m_ref, w2m_ref, b2m_ref,
                     w1k_ref, b1k_ref, w2k_ref, b2k_ref,
                     o_ref, *, tau):
    # Concatenate the two views inside VMEM (sublane concat of full tiles).
    mol = jnp.concatenate([s1_ref[...], s2_ref[...]], axis=0)     # (M, D)
    kg = jnp.concatenate([q1_ref[...], q2_ref[...]], axis=0)      # (M, D)

    def proj(x, w1, b1, w2, b2):
        h = jnp.dot(x, w1, preferred_element_type=jnp.float32) + b1
        # ELU(alpha=1): x if x > 0 else exp(x) - 1 (clamp exp arg for safety).
        h = jnp.where(h > 0.0, h, jnp.exp(jnp.minimum(h, 0.0)) - 1.0)
        return jnp.dot(h, w2, preferred_element_type=jnp.float32) + b2

    zm = proj(mol, w1m_ref[...], b1m_ref[...], w2m_ref[...], b2m_ref[...])
    zk = proj(kg, w1k_ref[...], b1k_ref[...], w2k_ref[...], b2k_ref[...])

    # Row-normalize before the matmul: sim = exp(<zm_n, zk_n> / tau).
    # rsqrt lands on the EUP slot; avoids per-element divides and nk.T.
    inv_nm = lax.rsqrt(jnp.sum(zm * zm, axis=-1, keepdims=True) + 1e-12)
    inv_nk = lax.rsqrt(jnp.sum(zk * zk, axis=-1, keepdims=True) + 1e-12)
    zm_n = zm * inv_nm
    zk_n = zk * inv_nk

    # (M, M) cosine similarity; contract on the feature dim of both operands
    # so no transposed copy of zk is materialized.
    cos = lax.dot_general(zm_n, zk_n, (((1,), (1,)), ((), ())),
                          preferred_element_type=jnp.float32)
    sim = jnp.exp(cos * (1.0 / tau))

    pos = pos_ref[...]                # (M, M) f32, symmetric positive mask
    simpos = sim * pos

    # str -> seq: row-wise.  -mean( log(sum(sim*pos, 1)) - log(sum(sim, 1)+eps) )
    row_num = jnp.sum(simpos, axis=1, keepdims=True)              # (M, 1)
    row_den = jnp.sum(sim, axis=1, keepdims=True) + 1e-8
    lori_str = -jnp.mean(jnp.log(row_num) - jnp.log(row_den))

    # seq -> str: column-wise on sim (== row-wise on sim.T since pos == pos.T),
    # so the (M, M) transpose is never materialized.
    col_num = jnp.sum(simpos, axis=0, keepdims=True)              # (1, M)
    col_den = jnp.sum(sim, axis=0, keepdims=True) + 1e-8
    lori_seq = -jnp.mean(jnp.log(col_num) - jnp.log(col_den))

    o_ref[0, 0] = lori_str + lori_seq


def contrast_forward(params, tau, str1, str2, seq1, seq2, p1_index, p2_index):
    # Positive mask pos[i, j] = 1 iff p_index[i] == p_index[j].  This replaces
    # the numpy/argwhere/coo_matrix construction with a vectorized compare and
    # gives the kernel a lane-dense (M, M) f32 tile instead of (M, 1) ints.
    p = jnp.concatenate([p1_index, p2_index], axis=0).astype(jnp.int32)
    pos = (p[:, None] == p[None, :]).astype(jnp.float32)          # (M, M)

    kernel = functools.partial(_contrast_kernel, tau=float(tau))
    # TODO(synk): for large batch sizes, tile the (M, M) similarity over a grid
    # with online row/col accumulators (monolithic sim will exhaust VMEM,
    # especially on v7x's 64 MiB).
    out = pl.pallas_call(
        kernel,
        out_shape=jax.ShapeDtypeStruct((1, 1), jnp.float32),
        in_specs=[pl.BlockSpec(memory_space=pltpu.MemorySpace.VMEM)] * 13,
        out_specs=pl.BlockSpec(memory_space=pltpu.MemorySpace.SMEM),
    )(str1, str2, seq1, seq2, pos,
      *params["MOL"], *params["KG"])
    return out[0, 0]


# ----------------------------------------------------------------------------
# Parameter construction (deterministic, mirrors nn.Linear + xavier_normal_)
# ----------------------------------------------------------------------------
def make_proj_params(key, dim, gain=1.414):
    k1, k2, k3, k4 = jax.random.split(key, 4)
    std = gain * (2.0 / (dim + dim)) ** 0.5          # xavier_normal_ std
    w1 = jax.random.normal(k1, (dim, dim), jnp.float32) * std   # (out, in)
    w2 = jax.random.normal(k2, (dim, dim), jnp.float32) * std
    bound = 1.0 / (dim ** 0.5)                        # PyTorch default bias init
    b1 = jax.random.uniform(k3, (1, dim), jnp.float32, -bound, bound)
    b2 = jax.random.uniform(k4, (1, dim), jnp.float32, -bound, bound)
    # pre-transpose weights to (in, out) for x @ Wt
    return (w1.T, b1, w2.T, b2)


# ----------------------------------------------------------------------------
if __name__ == "__main__":
    out_dim = 128     # lane-dense feature width
    n_half = 8        # per-view batch; total M = 16
    tau = 0.5

    root = jax.random.PRNGKey(0)
    k_mol, k_kg, k_s1, k_s2, k_q1, k_q2, k_p1, k_p2 = jax.random.split(root, 8)

    params = {
        "MOL": make_proj_params(k_mol, out_dim),
        "KG": make_proj_params(k_kg, out_dim),
    }

    str1 = jax.random.normal(k_s1, (n_half, out_dim), jnp.float32)
    str2 = jax.random.normal(k_s2, (n_half, out_dim), jnp.float32)
    seq1 = jax.random.normal(k_q1, (n_half, out_dim), jnp.float32)
    seq2 = jax.random.normal(k_q2, (n_half, out_dim), jnp.float32)
    # indices with deliberate collisions so the pos mask has off-diagonal ones
    p1_index = jax.random.randint(k_p1, (n_half,), 0, 5, jnp.int32)
    p2_index = jax.random.randint(k_p2, (n_half,), 0, 5, jnp.int32)

    loss = contrast_forward(params, tau, str1, str2, seq1, seq2,
                            p1_index, p2_index)
    loss = jax.block_until_ready(loss)

    assert loss.shape == ()
    assert bool(jnp.isfinite(loss))
    print("KERNEL_OK")
</pallas_src>

<mosaic_0001>
module attributes {stable_mosaic.version = 11 : i64} {
  func.func @_contrast_kernel(%arg0: memref<8x128xf32, #tpu.memory_space<vmem>>, %arg1: memref<8x128xf32, #tpu.memory_space<vmem>>, %arg2: memref<8x128xf32, #tpu.memory_space<vmem>>, %arg3: memref<8x128xf32, #tpu.memory_space<vmem>>, %arg4: memref<16x16xf32, #tpu.memory_space<vmem>>, %arg5: memref<128x128xf32, #tpu.memory_space<vmem>>, %arg6: memref<1x128xf32, #tpu.memory_space<vmem>>, %arg7: memref<128x128xf32, #tpu.memory_space<vmem>>, %arg8: memref<1x128xf32, #tpu.memory_space<vmem>>, %arg9: memref<128x128xf32, #tpu.memory_space<vmem>>, %arg10: memref<1x128xf32, #tpu.memory_space<vmem>>, %arg11: memref<128x128xf32, #tpu.memory_space<vmem>>, %arg12: memref<1x128xf32, #tpu.memory_space<vmem>>, %arg13: memref<1x1xf32, #tpu.memory_space<smem>>) attributes {dimension_semantics = [], scalar_prefetch = 0 : i64, scratch_operands = 0 : i64, tpu.core_type = #tpu.core_type<tc>} {
    %c0 = arith.constant 0 : index
    %c0_0 = arith.constant 0 : index
    %0 = vector.load %arg0[%c0, %c0_0] : memref<8x128xf32, #tpu.memory_space<vmem>>, vector<8x128xf32>
    %c0_1 = arith.constant 0 : index
    %c0_2 = arith.constant 0 : index
    %1 = vector.load %arg1[%c0_1, %c0_2] : memref<8x128xf32, #tpu.memory_space<vmem>>, vector<8x128xf32>
    %2 = tpu.concatenate %0, %1 in 0 : vector<8x128xf32>, vector<8x128xf32> -> vector<16x128xf32>
    %c0_3 = arith.constant 0 : index
    %c0_4 = arith.constant 0 : index
    %3 = vector.load %arg2[%c0_3, %c0_4] : memref<8x128xf32, #tpu.memory_space<vmem>>, vector<8x128xf32>
    %c0_5 = arith.constant 0 : index
    %c0_6 = arith.constant 0 : index
    %4 = vector.load %arg3[%c0_5, %c0_6] : memref<8x128xf32, #tpu.memory_space<vmem>>, vector<8x128xf32>
    %5 = tpu.concatenate %3, %4 in 0 : vector<8x128xf32>, vector<8x128xf32> -> vector<16x128xf32>
    %c0_7 = arith.constant 0 : index
    %c0_8 = arith.constant 0 : index
    %6 = vector.load %arg5[%c0_7, %c0_8] : memref<128x128xf32, #tpu.memory_space<vmem>>, vector<128x128xf32>
    %c0_9 = arith.constant 0 : index
    %c0_10 = arith.constant 0 : index
    %7 = vector.load %arg6[%c0_9, %c0_10] : memref<1x128xf32, #tpu.memory_space<vmem>>, vector<1x128xf32>
    %c0_11 = arith.constant 0 : index
    %c0_12 = arith.constant 0 : index
    %8 = vector.load %arg7[%c0_11, %c0_12] : memref<128x128xf32, #tpu.memory_space<vmem>>, vector<128x128xf32>
    %c0_13 = arith.constant 0 : index
    %c0_14 = arith.constant 0 : index
    %9 = vector.load %arg8[%c0_13, %c0_14] : memref<1x128xf32, #tpu.memory_space<vmem>>, vector<1x128xf32>
    %cst = arith.constant dense<0.000000e+00> : vector<16x128xf32>
    %10 = tpu.matmul %2, %6, %cst {dimension_numbers = #tpu.dot_dimension_numbers<[1], [0], [0], [1], [0, 0, 1, 1], [], []>} : vector<16x128xf32>, vector<128x128xf32>, vector<16x128xf32> -> vector<16x128xf32>
    %11 = vector.broadcast %7 : vector<1x128xf32> to vector<16x128xf32>
    %12 = arith.addf %10, %11 : vector<16x128xf32>
    %cst_15 = arith.constant 0.000000e+00 : f32
    %13 = vector.broadcast %cst_15 : f32 to vector<16x128xf32>
    %14 = arith.cmpf ogt, %12, %13 : vector<16x128xf32>
    %cst_16 = arith.constant 0.000000e+00 : f32
    %15 = vector.broadcast %cst_16 : f32 to vector<16x128xf32>
    %16 = arith.minimumf %12, %15 : vector<16x128xf32>
    %17 = math.exp %16 : vector<16x128xf32>
    %cst_17 = arith.constant 1.000000e+00 : f32
    %18 = vector.broadcast %cst_17 : f32 to vector<16x128xf32>
    %19 = arith.subf %17, %18 : vector<16x128xf32>
    %20 = arith.select %14, %12, %19 : vector<16x128xi1>, vector<16x128xf32>
    %cst_18 = arith.constant dense<0.000000e+00> : vector<16x128xf32>
    %21 = tpu.matmul %20, %8, %cst_18 {dimension_numbers = #tpu.dot_dimension_numbers<[1], [0], [0], [1], [0, 0, 1, 1], [], []>} : vector<16x128xf32>, vector<128x128xf32>, vector<16x128xf32> -> vector<16x128xf32>
    %22 = vector.broadcast %9 : vector<1x128xf32> to vector<16x128xf32>
    %23 = arith.addf %21, %22 : vector<16x128xf32>
    %c0_19 = arith.constant 0 : index
    %c0_20 = arith.constant 0 : index
    %24 = vector.load %arg9[%c0_19, %c0_20] : memref<128x128xf32, #tpu.memory_space<vmem>>, vector<128x128xf32>
    %c0_21 = arith.constant 0 : index
    %c0_22 = arith.constant 0 : index
    %25 = vector.load %arg10[%c0_21, %c0_22] : memref<1x128xf32, #tpu.memory_space<vmem>>, vector<1x128xf32>
    %c0_23 = arith.constant 0 : index
    %c0_24 = arith.constant 0 : index
    %26 = vector.load %arg11[%c0_23, %c0_24] : memref<128x128xf32, #tpu.memory_space<vmem>>, vector<128x128xf32>
    %c0_25 = arith.constant 0 : index
    %c0_26 = arith.constant 0 : index
    %27 = vector.load %arg12[%c0_25, %c0_26] : memref<1x128xf32, #tpu.memory_space<vmem>>, vector<1x128xf32>
    %cst_27 = arith.constant dense<0.000000e+00> : vector<16x128xf32>
    %28 = tpu.matmul %5, %24, %cst_27 {dimension_numbers = #tpu.dot_dimension_numbers<[1], [0], [0], [1], [0, 0, 1, 1], [], []>} : vector<16x128xf32>, vector<128x128xf32>, vector<16x128xf32> -> vector<16x128xf32>
    %29 = vector.broadcast %25 : vector<1x128xf32> to vector<16x128xf32>
    %30 = arith.addf %28, %29 : vector<16x128xf32>
    %cst_28 = arith.constant 0.000000e+00 : f32
    %31 = vector.broadcast %cst_28 : f32 to vector<16x128xf32>
    %32 = arith.cmpf ogt, %30, %31 : vector<16x128xf32>
    %cst_29 = arith.constant 0.000000e+00 : f32
    %33 = vector.broadcast %cst_29 : f32 to vector<16x128xf32>
    %34 = arith.minimumf %30, %33 : vector<16x128xf32>
    %35 = math.exp %34 : vector<16x128xf32>
    %cst_30 = arith.constant 1.000000e+00 : f32
    %36 = vector.broadcast %cst_30 : f32 to vector<16x128xf32>
    %37 = arith.subf %35, %36 : vector<16x128xf32>
    %38 = arith.select %32, %30, %37 : vector<16x128xi1>, vector<16x128xf32>
    %cst_31 = arith.constant dense<0.000000e+00> : vector<16x128xf32>
    %39 = tpu.matmul %38, %26, %cst_31 {dimension_numbers = #tpu.dot_dimension_numbers<[1], [0], [0], [1], [0, 0, 1, 1], [], []>} : vector<16x128xf32>, vector<128x128xf32>, vector<16x128xf32> -> vector<16x128xf32>
    %40 = vector.broadcast %27 : vector<1x128xf32> to vector<16x128xf32>
    %41 = arith.addf %39, %40 : vector<16x128xf32>
    %42 = arith.mulf %23, %23 : vector<16x128xf32>
    %cst_32 = arith.constant dense<0.000000e+00> : vector<16xf32>
    %43 = vector.multi_reduction <add>, %42, %cst_32 [1] : vector<16x128xf32> to vector<16xf32>
    %44 = vector.shape_cast %43 : vector<16xf32> to vector<16x1xf32>
    %cst_33 = arith.constant 9.99999996E-13 : f32
    %45 = vector.broadcast %cst_33 : f32 to vector<16x1xf32>
    %46 = arith.addf %44, %45 : vector<16x1xf32>
    %47 = math.rsqrt %46 : vector<16x1xf32>
    %48 = arith.mulf %41, %41 : vector<16x128xf32>
    %cst_34 = arith.constant dense<0.000000e+00> : vector<16xf32>
    %49 = vector.multi_reduction <add>, %48, %cst_34 [1] : vector<16x128xf32> to vector<16xf32>
    %50 = vector.shape_cast %49 : vector<16xf32> to vector<16x1xf32>
    %cst_35 = arith.constant 9.99999996E-13 : f32
    %51 = vector.broadcast %cst_35 : f32 to vector<16x1xf32>
    %52 = arith.addf %50, %51 : vector<16x1xf32>
    %53 = math.rsqrt %52 : vector<16x1xf32>
    %54 = vector.broadcast %47 : vector<16x1xf32> to vector<16x128xf32>
    %55 = arith.mulf %23, %54 : vector<16x128xf32>
    %56 = vector.broadcast %53 : vector<16x1xf32> to vector<16x128xf32>
    %57 = arith.mulf %41, %56 : vector<16x128xf32>
    %cst_36 = arith.constant dense<0.000000e+00> : vector<16x16xf32>
    %58 = tpu.matmul %55, %57, %cst_36 {dimension_numbers = #tpu.dot_dimension_numbers<[1], [1], [0], [0], [0, 0, 1, 0], [], []>} : vector<16x128xf32>, vector<16x128xf32>, vector<16x16xf32> -> vector<16x16xf32>
    %cst_37 = arith.constant 2.000000e+00 : f32
    %59 = vector.broadcast %cst_37 : f32 to vector<16x16xf32>
    %60 = arith.mulf %58, %59 : vector<16x16xf32>
    %61 = math.exp %60 : vector<16x16xf32>
    %c0_38 = arith.constant 0 : index
    %c0_39 = arith.constant 0 : index
    %62 = vector.load %arg4[%c0_38, %c0_39] : memref<16x16xf32, #tpu.memory_space<vmem>>, vector<16x16xf32>
    %63 = arith.mulf %61, %62 : vector<16x16xf32>
    %cst_40 = arith.constant dense<0.000000e+00> : vector<16xf32>
    %64 = vector.multi_reduction <add>, %63, %cst_40 [1] : vector<16x16xf32> to vector<16xf32>
    %65 = vector.shape_cast %64 : vector<16xf32> to vector<16x1xf32>
    %cst_41 = arith.constant dense<0.000000e+00> : vector<16xf32>
    %66 = vector.multi_reduction <add>, %61, %cst_41 [1] : vector<16x16xf32> to vector<16xf32>
    %67 = vector.shape_cast %66 : vector<16xf32> to vector<16x1xf32>
    %cst_42 = arith.constant 9.99999993E-9 : f32
    %68 = vector.broadcast %cst_42 : f32 to vector<16x1xf32>
    %69 = arith.addf %67, %68 : vector<16x1xf32>
    %70 = math.log %65 : vector<16x1xf32>
    %71 = math.log %69 : vector<16x1xf32>
    %72 = arith.subf %70, %71 : vector<16x1xf32>
    %73 = vector.shape_cast %72 : vector<16x1xf32> to vector<1x16x1xf32>
    %cst_43 = arith.constant dense<0.000000e+00> : vector<1xf32>
    %74 = vector.multi_reduction <add>, %73, %cst_43 [1, 2] : vector<1x16x1xf32> to vector<1xf32>
    %75 = vector.shape_cast %74 : vector<1xf32> to vector<1x1x1xf32>
    %76 = vector.extract %75[0, 0, 0] : f32 from vector<1x1x1xf32>
    %cst_44 = arith.constant 1.600000e+01 : f32
    %77 = arith.divf %76, %cst_44 : f32
    %cst_45 = arith.constant 0.000000e+00 : f32
    %78 = arith.subf %cst_45, %77 : f32
    %cst_46 = arith.constant dense<0.000000e+00> : vector<16xf32>
    %79 = vector.multi_reduction <add>, %63, %cst_46 [0] : vector<16x16xf32> to vector<16xf32>
    %80 = vector.shape_cast %79 : vector<16xf32> to vector<1x16xf32>
    %cst_47 = arith.constant dense<0.000000e+00> : vector<16xf32>
    %81 = vector.multi_reduction <add>, %61, %cst_47 [0] : vector<16x16xf32> to vector<16xf32>
    %82 = vector.shape_cast %81 : vector<16xf32> to vector<1x16xf32>
    %cst_48 = arith.constant 9.99999993E-9 : f32
    %83 = vector.broadcast %cst_48 : f32 to vector<1x16xf32>
    %84 = arith.addf %82, %83 : vector<1x16xf32>
    %85 = math.log %80 : vector<1x16xf32>
    %86 = math.log %84 : vector<1x16xf32>
    %87 = arith.subf %85, %86 : vector<1x16xf32>
    %88 = vector.shape_cast %87 : vector<1x16xf32> to vector<1x1x16xf32>
    %cst_49 = arith.constant dense<0.000000e+00> : vector<1xf32>
    %89 = vector.multi_reduction <add>, %88, %cst_49 [1, 2] : vector<1x1x16xf32> to vector<1xf32>
    %90 = vector.shape_cast %89 : vector<1xf32> to vector<1x1x1xf32>
    %91 = vector.extract %90[0, 0, 0] : f32 from vector<1x1x1xf32>
    %cst_50 = arith.constant 1.600000e+01 : f32
    %92 = arith.divf %91, %cst_50 : f32
    %cst_51 = arith.constant 0.000000e+00 : f32
    %93 = arith.subf %cst_51, %92 : f32
    %94 = arith.addf %78, %93 : f32
    %c0_52 = arith.constant 0 : index
    %c0_53 = arith.constant 0 : index
    %95 = memref.load %arg13[%c0_52, %c0_53] : memref<1x1xf32, #tpu.memory_space<smem>>
    memref.store %94, %arg13[%c0_52, %c0_53] : memref<1x1xf32, #tpu.memory_space<smem>>
    return
  }
}

</mosaic_0001>

<llo_original>
// kernel: tpu_custom_call.1
$region0: #{tpu_custom_call.1}
  #allocation0 [shape = 'u32[]', space=smem, size = 0x4, offset = 0x4, fixed_abs, tag = 'smem constant byte address 0x4 - core index']
  #allocation1 [shape = 'u32[72,128]{1,0:T(1,128)}', space=vmem, size = 0x9000, scoped, tag = 'internal scratch']
  %s0 = inlined_call_operand.hbm [shape: f32[8,128], index: 0, kind: input, shape index: {}]
  %s1 = inlined_call_operand.hbm [shape: f32[8,128], index: 1, kind: input, shape index: {}]
  %s2 = inlined_call_operand.hbm [shape: f32[8,128], index: 2, kind: input, shape index: {}]
  %s3 = inlined_call_operand.hbm [shape: f32[8,128], index: 3, kind: input, shape index: {}]
  %s4 = inlined_call_operand.hbm [shape: f32[16,16], index: 4, kind: input, shape index: {}]
  %s5 = inlined_call_operand.hbm [shape: f32[128,128], index: 5, kind: input, shape index: {}]
  %s6 = inlined_call_operand.vmem [shape: f32[1,128], index: 6, kind: input, shape index: {}]
  %s7 = inlined_call_operand.hbm [shape: f32[128,128], index: 7, kind: input, shape index: {}]
  %s8 = inlined_call_operand.vmem [shape: f32[1,128], index: 8, kind: input, shape index: {}]
  %s9 = inlined_call_operand.hbm [shape: f32[128,128], index: 9, kind: input, shape index: {}]
  %s10 = inlined_call_operand.vmem [shape: f32[1,128], index: 10, kind: input, shape index: {}]
  %s11 = inlined_call_operand.hbm [shape: f32[128,128], index: 11, kind: input, shape index: {}]
  %s12 = inlined_call_operand.vmem [shape: f32[1,128], index: 12, kind: input, shape index: {}]
  %s13 = inlined_call_operand.hbm [shape: f32[1,1], index: 13, kind: output, shape index: {}]
  %s14 = sld [smem:[#allocation0]]
  $region98: #{tpu_custom_call.1} parent=0
    _
  %s16 = ssub.s32 1, %s14
  %s17 = scalar_select 0, %s16, %s14
  $region1: #{tpu_custom_call.1} parent=0
    #allocation2 [shape = 'u8[4096]{0}', space=vmem, size = 0x1000, scoped, tag = 'input window, operand 0, single buffered']
    #allocation3 [shape = 's32[1]{0}', space=sflag, size = 0x4, scoped, tag = 'scoped memory for tpu_custom_call.1']
    #allocation4 [shape = 's32[1]{0}', space=sflag, size = 0x4, scoped, tag = 'scoped memory for tpu_custom_call.1']
    #allocation5 [shape = 'u8[4096]{0}', space=vmem, size = 0x1000, scoped, tag = 'input window, operand 1, single buffered']
    #allocation6 [shape = 's32[1]{0}', space=sflag, size = 0x4, scoped, tag = 'scoped memory for tpu_custom_call.1']
    #allocation7 [shape = 'u8[4096]{0}', space=vmem, size = 0x1000, scoped, tag = 'input window, operand 2, single buffered']
    #allocation8 [shape = 'u8[4096]{0}', space=vmem, size = 0x1000, scoped, tag = 'input window, operand 3, single buffered']
    #allocation9 [shape = 's32[1]{0}', space=sflag, size = 0x4, scoped, tag = 'scoped memory for tpu_custom_call.1']
    #allocation10 [shape = 'u8[8192]{0}', space=vmem, size = 0x2000, scoped, tag = 'input window, operand 4, single buffered']
    #allocation11 [shape = 'u8[65536]{0}', space=vmem, size = 0x10000, scoped, tag = 'input window, operand 5, single buffered']
    #allocation12 [shape = 's32[1]{0}', space=sflag, size = 0x4, scoped, tag = 'scoped memory for tpu_custom_call.1']
    #allocation13 [shape = 'u8[65536]{0}', space=vmem, size = 0x10000, scoped, tag = 'input window, operand 7, single buffered']
    #allocation14 [shape = 'u8[65536]{0}', space=vmem, size = 0x10000, scoped, tag = 'input window, operand 9, single buffered']
    #allocation15 [shape = 's32[1]{0}', space=sflag, size = 0x4, scoped, tag = 'scoped memory for tpu_custom_call.1']
    #allocation16 [shape = 'u8[65536]{0}', space=vmem, size = 0x10000, scoped, tag = 'input window, operand 11, single buffered']
    #allocation17 [shape = 'u8[512]{0}', space=smem, size = 0x200, scoped, tag = 'output window, operand 0, single buffered']
    %18 = vsyncpa [#allocation3], 0
    %19 = vsyncpa [#allocation6], 0
    %20 = vsyncpa [#allocation9], 0
    %21 = vsyncpa [#allocation12], 0
    %22 = vsyncpa [#allocation15], 0
    %23 = vsyncpa [#allocation4], 0
    // Predicated region
    $region2: #{tpu_custom_call.1} parent=1 // pred_check
      _
    $region3: #{tpu_custom_call.1} parent=1 // pred_check_branch
      %25 = sbr.rel (0) target = $region5
    $region4: #{tpu_custom_call.1} parent=1 // pred_region
      %27 = vsyncadd [#allocation3], 0
      %s29 = sshll.u32 %s0, 4
      %s30 = int_to_ptr.hbm [resolvable:$true] %s29
      %s31 = sshll.u32 [#allocation2], 4
      %s32 = int_to_ptr.vmem [resolvable:$true] %s31
      %34 = dma.hbm_to_vmem [thread:$0]  %s30, 128, %s32, [#allocation3]
    $region5: #{tpu_custom_call.1} parent=1 // pred_fallthru
      _
    // Predicated region
    $region6: #{tpu_custom_call.1} parent=1 // pred_check
      _
    $region7: #{tpu_custom_call.1} parent=1 // pred_check_branch
      %36 = sbr.rel (0) target = $region9
    $region8: #{tpu_custom_call.1} parent=1 // pred_region
      %38 = vsyncadd [#allocation6], 0
      %s40 = sshll.u32 %s1, 4
      %s41 = int_to_ptr.hbm [resolvable:$true] %s40
      %s42 = sshll.u32 [#allocation5], 4
      %s43 = int_to_ptr.vmem [resolvable:$true] %s42
      %45 = dma.hbm_to_vmem [thread:$0]  %s41, 128, %s43, [#allocation6]
    $region9: #{tpu_custom_call.1} parent=1 // pred_fallthru
      _
    // Predicated region
    $region10: #{tpu_custom_call.1} parent=1 // pred_check
      _
    $region11: #{tpu_custom_call.1} parent=1 // pred_check_branch
      %47 = sbr.rel (0) target = $region13
    $region12: #{tpu_custom_call.1} parent=1 // pred_region
      %49 = vsyncadd [#allocation6], 0
      %s51 = sshll.u32 %s2, 4
      %s52 = int_to_ptr.hbm [resolvable:$true] %s51
      %s53 = sshll.u32 [#allocation7], 4
      %s54 = int_to_ptr.vmem [resolvable:$true] %s53
      %56 = dma.hbm_to_vmem [thread:$0]  %s52, 128, %s54, [#allocation6]
    $region13: #{tpu_custom_call.1} parent=1 // pred_fallthru
      _
    // Predicated region
    $region14: #{tpu_custom_call.1} parent=1 // pred_check
      _
    $region15: #{tpu_custom_call.1} parent=1 // pred_check_branch
      %58 = sbr.rel (0) target = $region17
    $region16: #{tpu_custom_call.1} parent=1 // pred_region
      %60 = vsyncadd [#allocation9], 0
      %s62 = sshll.u32 %s3, 4
      %s63 = int_to_ptr.hbm [resolvable:$true] %s62
      %s64 = sshll.u32 [#allocation8], 4
      %s65 = int_to_ptr.vmem [resolvable:$true] %s64
      %67 = dma.hbm_to_vmem [thread:$0]  %s63, 128, %s65, [#allocation9]
    $region17: #{tpu_custom_call.1} parent=1 // pred_fallthru
      _
    // Predicated region
    $region18: #{tpu_custom_call.1} parent=1 // pred_check
      _
    $region19: #{tpu_custom_call.1} parent=1 // pred_check_branch
      %69 = sbr.rel (0) target = $region21
    $region20: #{tpu_custom_call.1} parent=1 // pred_region
      %71 = vsyncadd [#allocation9], 0
      %s72 = sshll.u32 %s4, 4
      %s73 = int_to_ptr.hbm [resolvable:$true] %s72
      %s74 = sshll.u32 [#allocation10], 4
      %s75 = int_to_ptr.vmem [resolvable:$true] %s74
      %80 = dma.hbm_to_vmem [thread:$0]  %s73, 256, %s75, [#allocation9], 128, 128, 8
    $region21: #{tpu_custom_call.1} parent=1 // pred_fallthru
      _
    // Predicated region
    $region22: #{tpu_custom_call.1} parent=1 // pred_check
      _
    $region23: #{tpu_custom_call.1} parent=1 // pred_check_branch
      %82 = sbr.rel (0) target = $region25
    $region24: #{tpu_custom_call.1} parent=1 // pred_region
      %84 = vsyncadd [#allocation12], 0
      %s85 = sshll.u32 %s5, 4
      %s86 = int_to_ptr.hbm [resolvable:$true] %s85
      %s87 = sshll.u32 [#allocation11], 4
      %s88 = int_to_ptr.vmem [resolvable:$true] %s87
      %93 = dma.hbm_to_vmem [thread:$0]  %s86, 2048, %s88, [#allocation12], 128, 128, 8
    $region25: #{tpu_custom_call.1} parent=1 // pred_fallthru
      _
    // Predicated region
    $region26: #{tpu_custom_call.1} parent=1 // pred_check
      _
    $region27: #{tpu_custom_call.1} parent=1 // pred_check_branch
      %95 = sbr.rel (0) target = $region29
    $region28: #{tpu_custom_call.1} parent=1 // pred_region
      _
    $region29: #{tpu_custom_call.1} parent=1 // pred_fallthru
      _
    // Predicated region
    $region30: #{tpu_custom_call.1} parent=1 // pred_check
      _
    $region31: #{tpu_custom_call.1} parent=1 // pred_check_branch
      %97 = sbr.rel (0) target = $region33
    $region32: #{tpu_custom_call.1} parent=1 // pred_region
      %99 = vsyncadd [#allocation12], 0
      %s100 = sshll.u32 %s7, 4
      %s101 = int_to_ptr.hbm [resolvable:$true] %s100
      %s102 = sshll.u32 [#allocation13], 4
      %s103 = int_to_ptr.vmem [resolvable:$true] %s102
      %108 = dma.hbm_to_vmem [thread:$0]  %s101, 2048, %s103, [#allocation12], 128, 128, 8
    $region33: #{tpu_custom_call.1} parent=1 // pred_fallthru
      _
    // Predicated region
    $region34: #{tpu_custom_call.1} parent=1 // pred_check
      _
    $region35: #{tpu_custom_call.1} parent=1 // pred_check_branch
      %110 = sbr.rel (0) target = $region37
    $region36: #{tpu_custom_call.1} parent=1 // pred_region
      _
    $region37: #{tpu_custom_call.1} parent=1 // pred_fallthru
      _
    // Predicated region
    $region38: #{tpu_custom_call.1} parent=1 // pred_check
      _
    $region39: #{tpu_custom_call.1} parent=1 // pred_check_branch
      %112 = sbr.rel (0) target = $region41
    $region40: #{tpu_custom_call.1} parent=1 // pred_region
      %114 = vsyncadd [#allocation15], 0
      %s115 = sshll.u32 %s9, 4
      %s116 = int_to_ptr.hbm [resolvable:$true] %s115
      %s117 = sshll.u32 [#allocation14], 4
      %s118 = int_to_ptr.vmem [resolvable:$true] %s117
      %123 = dma.hbm_to_vmem [thread:$0]  %s116, 2048, %s118, [#allocation15], 128, 128, 8
    $region41: #{tpu_custom_call.1} parent=1 // pred_fallthru
      _
    // Predicated region
    $region42: #{tpu_custom_call.1} parent=1 // pred_check
      _
    $region43: #{tpu_custom_call.1} parent=1 // pred_check_branch
      %125 = sbr.rel (0) target = $region45
    $region44: #{tpu_custom_call.1} parent=1 // pred_region
      _
    $region45: #{tpu_custom_call.1} parent=1 // pred_fallthru
      _
    // Predicated region
    $region46: #{tpu_custom_call.1} parent=1 // pred_check
      _
    $region47: #{tpu_custom_call.1} parent=1 // pred_check_branch
      %127 = sbr.rel (0) target = $region49
    $region48: #{tpu_custom_call.1} parent=1 // pred_region
      %129 = vsyncadd [#allocation15], 0
      %s130 = sshll.u32 %s11, 4
      %s131 = int_to_ptr.hbm [resolvable:$true] %s130
      %s132 = sshll.u32 [#allocation16], 4
      %s133 = int_to_ptr.vmem [resolvable:$true] %s132
      %138 = dma.hbm_to_vmem [thread:$0]  %s131, 2048, %s133, [#allocation15], 128, 128, 8
    $region49: #{tpu_custom_call.1} parent=1 // pred_fallthru
      _
    // Predicated region
    $region50: #{tpu_custom_call.1} parent=1 // pred_check
      _
    $region51: #{tpu_custom_call.1} parent=1 // pred_check_branch
      %140 = sbr.rel (0) target = $region53
    $region52: #{tpu_custom_call.1} parent=1 // pred_region
      _
    $region53: #{tpu_custom_call.1} parent=1 // pred_fallthru
      _
    // Predicated region
    $region54: #{tpu_custom_call.1} parent=1 // pred_check
      _
    $region55: #{tpu_custom_call.1} parent=1 // pred_check_branch
      %142 = sbr.rel (0) target = $region57
    $region56: #{tpu_custom_call.1} parent=1 // pred_region
      %144 = dma.done [#allocation3], 128
    $region57: #{tpu_custom_call.1} parent=1 // pred_fallthru
      _
    // Predicated region
    $region58: #{tpu_custom_call.1} parent=1 // pred_check
      _
    $region59: #{tpu_custom_call.1} parent=1 // pred_check_branch
      %146 = sbr.rel (0) target = $region61
    $region60: #{tpu_custom_call.1} parent=1 // pred_region
      %148 = dma.done [#allocation6], 128
    $region61: #{tpu_custom_call.1} parent=1 // pred_fallthru
      _
    // Predicated region
    $region62: #{tpu_custom_call.1} parent=1 // pred_check
      _
    $region63: #{tpu_custom_call.1} parent=1 // pred_check_branch
      %150 = sbr.rel (0) target = $region65
    $region64: #{tpu_custom_call.1} parent=1 // pred_region
      %152 = dma.done [#allocation6], 128
    $region65: #{tpu_custom_call.1} parent=1 // pred_fallthru
      _
    // Predicated region
    $region66: #{tpu_custom_call.1} parent=1 // pred_check
      _
    $region67: #{tpu_custom_call.1} parent=1 // pred_check_branch
      %154 = sbr.rel (0) target = $region69
    $region68: #{tpu_custom_call.1} parent=1 // pred_region
      %156 = dma.done [#allocation9], 128
    $region69: #{tpu_custom_call.1} parent=1 // pred_fallthru
      _
    // Predicated region
    $region70: #{tpu_custom_call.1} parent=1 // pred_check
      _
    $region71: #{tpu_custom_call.1} parent=1 // pred_check_branch
      %158 = sbr.rel (0) target = $region73
    $region72: #{tpu_custom_call.1} parent=1 // pred_region
      %160 = dma.done [#allocation9], 256
    $region73: #{tpu_custom_call.1} parent=1 // pred_fallthru
      _
    // Predicated region
    $region74: #{tpu_custom_call.1} parent=1 // pred_check
      _
    $region75: #{tpu_custom_call.1} parent=1 // pred_check_branch
      %162 = sbr.rel (0) target = $region77
    $region76: #{tpu_custom_call.1} parent=1 // pred_region
      %164 = dma.done [#allocation12], 2048
    $region77: #{tpu_custom_call.1} parent=1 // pred_fallthru
      _
    // Predicated region
    $region78: #{tpu_custom_call.1} parent=1 // pred_check
      _
    $region79: #{tpu_custom_call.1} parent=1 // pred_check_branch
      %166 = sbr.rel (0) target = $region81
    $region80: #{tpu_custom_call.1} parent=1 // pred_region
      %168 = dma.done [#allocation12], 2048
    $region81: #{tpu_custom_call.1} parent=1 // pred_fallthru
      _
    // Predicated region
    $region82: #{tpu_custom_call.1} parent=1 // pred_check
      _
    $region83: #{tpu_custom_call.1} parent=1 // pred_check_branch
      %170 = sbr.rel (0) target = $region85
    $region84: #{tpu_custom_call.1} parent=1 // pred_region
      %172 = dma.done [#allocation15], 2048
    $region85: #{tpu_custom_call.1} parent=1 // pred_fallthru
      _
    // Predicated region
    $region86: #{tpu_custom_call.1} parent=1 // pred_check
      _
    $region87: #{tpu_custom_call.1} parent=1 // pred_check_branch
      %174 = sbr.rel (0) target = $region89
    $region88: #{tpu_custom_call.1} parent=1 // pred_region
      %176 = dma.done [#allocation15], 2048
    $region89: #{tpu_custom_call.1} parent=1 // pred_fallthru
      _
    %v177 = vld [vmem:[#allocation2] sm:$0xff]
    %v178 = vld [vmem:[#allocation5] sm:$0xff]
    %v179 = vld [vmem:[#allocation7] sm:$0xff]
    %v180 = vld [vmem:[#allocation8] sm:$0xff]
    %v181 = vld [vmem:[#allocation11] sm:$0xff]
    %v182 = vld [vmem:[#allocation11 + $0x8] sm:$0xff]
    %v183 = vld [vmem:[#allocation11 + $0x10] sm:$0xff]
    %v184 = vld [vmem:[#allocation11 + $0x18] sm:$0xff]
    %v185 = vld [vmem:[#allocation11 + $0x20] sm:$0xff]
    %v186 = vld [vmem:[#allocation11 + $0x28] sm:$0xff]
    %v187 = vld [vmem:[#allocation11 + $0x30] sm:$0xff]
    %v188 = vld [vmem:[#allocation11 + $0x38] sm:$0xff]
    %v189 = vld [vmem:[#allocation11 + $0x40] sm:$0xff]
    %v190 = vld [vmem:[#allocation11 + $0x48] sm:$0xff]
    %v191 = vld [vmem:[#allocation11 + $0x50] sm:$0xff]
    %v192 = vld [vmem:[#allocation11 + $0x58] sm:$0xff]
    %v193 = vld [vmem:[#allocation11 + $0x60] sm:$0xff]
    %v194 = vld [vmem:[#allocation11 + $0x68] sm:$0xff]
    %v195 = vld [vmem:[#allocation11 + $0x70] sm:$0xff]
    %v196 = vld [vmem:[#allocation11 + $0x78] sm:$0xff]
    %v197 = vld [vmem:[%s6] sm:$0x1]
    %v198 = vld [vmem:[#allocation13] sm:$0xff]
    %v199 = vld [vmem:[#allocation13 + $0x8] sm:$0xff]
    %v200 = vld [vmem:[#allocation13 + $0x10] sm:$0xff]
    %v201 = vld [vmem:[#allocation13 + $0x18] sm:$0xff]
    %v202 = vld [vmem:[#allocation13 + $0x20] sm:$0xff]
    %v203 = vld [vmem:[#allocation13 + $0x28] sm:$0xff]
    %v204 = vld [vmem:[#allocation13 + $0x30] sm:$0xff]
    %v205 = vld [vmem:[#allocation13 + $0x38] sm:$0xff]
    %v206 = vld [vmem:[#allocation13 + $0x40] sm:$0xff]
    %v207 = vld [vmem:[#allocation13 + $0x48] sm:$0xff]
    %v208 = vld [vmem:[#allocation13 + $0x50] sm:$0xff]
    %v209 = vld [vmem:[#allocation13 + $0x58] sm:$0xff]
    %v210 = vld [vmem:[#allocation13 + $0x60] sm:$0xff]
    %v211 = vld [vmem:[#allocation13 + $0x68] sm:$0xff]
    %v212 = vld [vmem:[#allocation13 + $0x70] sm:$0xff]
    %v213 = vld [vmem:[#allocation13 + $0x78] sm:$0xff]
    %v214 = vld [vmem:[%s8] sm:$0x1]
    %v216 = vperm.slane %v197, 0
    %218 = vmatpush.msra.mxu0 %v196
    %219 = vmatpush.msra.mxu0 %v195
    %220 = vmatpush.msra.mxu0 %v194
    %221 = vmatpush.msra.mxu0 %v193
    %222 = vmatpush.msra.mxu0 %v192
    %223 = vmatpush.msra.mxu0 %v191
    %224 = vmatpush.msra.mxu0 %v190
    %225 = vmatpush.msra.mxu0 %v189
    %226 = vmatpush.msra.mxu0 %v188
    %227 = vmatpush.msra.mxu0 %v187
    %228 = vmatpush.msra.mxu0 %v186
    %229 = vmatpush.msra.mxu0 %v185
    %230 = vmatpush.msra.mxu0 %v184
    %231 = vmatpush.msra.mxu0 %v183
    %232 = vmatpush.msra.mxu0 %v182
    %233 = vmatpush.msra.mxu0 %v181
    %234 = vmatmul.f32.gmra.mxu0 %v177
    %v235 = vpop.f32.mrf.mxu0
    %v236 = vadd.f32 %v216, %v235
    %237 = vmatmul.f32.gmra.mxu0 %v178
    %v238 = vpop.f32.mrf.mxu0
    %v239 = vadd.f32 %v216, %v238
    %240 = vdwg.mxu0
    %vm241 = vcmp.gt.f32.partialorder %v236, 0.0
    %vm242 = vcmp.gt.f32.partialorder %v239, 0.0
    %v243 = vmin.f32 %v236, 0.0
    %v244 = vmin.f32 %v239, 0.0
    %v245 = vmul.f32 %v243, 1.442695
    %v246 = vpow.pop %v245
    %v247 = vmul.f32 %v244, 1.442695
    %v248 = vpow.pop %v247
    %v249 = vsub.f32 %v246, 1.0
    %v250 = vsub.f32 %v248, 1.0
    %v251 = vsel %vm241, %v236, %v249
    %v252 = vsel %vm242, %v239, %v250
    %v254 = vperm.slane %v214, 0
    %256 = vmatpush.msra.mxu0 %v213
    %257 = vmatpush.msra.mxu0 %v212
    %258 = vmatpush.msra.mxu0 %v211
    %259 = vmatpush.msra.mxu0 %v210
    %260 = vmatpush.msra.mxu0 %v209
    %261 = vmatpush.msra.mxu0 %v208
    %262 = vmatpush.msra.mxu0 %v207
    %263 = vmatpush.msra.mxu0 %v206
    %264 = vmatpush.msra.mxu0 %v205
    %265 = vmatpush.msra.mxu0 %v204
    %266 = vmatpush.msra.mxu0 %v203
    %267 = vmatpush.msra.mxu0 %v202
    %268 = vmatpush.msra.mxu0 %v201
    %269 = vmatpush.msra.mxu0 %v200
    %270 = vmatpush.msra.mxu0 %v199
    %271 = vmatpush.msra.mxu0 %v198
    %272 = vmatmul.f32.gmra.mxu0 %v251
    %v273 = vpop.f32.mrf.mxu0
    %v274 = vadd.f32 %v254, %v273
    %275 = vmatmul.f32.gmra.mxu0 %v252
    %v276 = vpop.f32.mrf.mxu0
    %v277 = vadd.f32 %v254, %v276
    %278 = vdwg.mxu0
    %v279 = vld [vmem:[#allocation14] sm:$0xff]
    %v280 = vld [vmem:[#allocation14 + $0x8] sm:$0xff]
    %v281 = vld [vmem:[#allocation14 + $0x10] sm:$0xff]
    %v282 = vld [vmem:[#allocation14 + $0x18] sm:$0xff]
    %v283 = vld [vmem:[#allocation14 + $0x20] sm:$0xff]
    %v284 = vld [vmem:[#allocation14 + $0x28] sm:$0xff]
    %v285 = vld [vmem:[#allocation14 + $0x30] sm:$0xff]
    %v286 = vld [vmem:[#allocation14 + $0x38] sm:$0xff]
    %v287 = vld [vmem:[#allocation14 + $0x40] sm:$0xff]
    %v288 = vld [vmem:[#allocation14 + $0x48] sm:$0xff]
    %v289 = vld [vmem:[#allocation14 + $0x50] sm:$0xff]
    %v290 = vld [vmem:[#allocation14 + $0x58] sm:$0xff]
    %v291 = vld [vmem:[#allocation14 + $0x60] sm:$0xff]
    %v292 = vld [vmem:[#allocation14 + $0x68] sm:$0xff]
    %v293 = vld [vmem:[#allocation14 + $0x70] sm:$0xff]
    %v294 = vld [vmem:[#allocation14 + $0x78] sm:$0xff]
    %v295 = vld [vmem:[%s10] sm:$0x1]
    %v296 = vld [vmem:[#allocation16] sm:$0xff]
    %v297 = vld [vmem:[#allocation16 + $0x8] sm:$0xff]
    %v298 = vld [vmem:[#allocation16 + $0x10] sm:$0xff]
    %v299 = vld [vmem:[#allocation16 + $0x18] sm:$0xff]
    %v300 = vld [vmem:[#allocation16 + $0x20] sm:$0xff]
    %v301 = vld [vmem:[#allocation16 + $0x28] sm:$0xff]
    %v302 = vld [vmem:[#allocation16 + $0x30] sm:$0xff]
    %v303 = vld [vmem:[#allocation16 + $0x38] sm:$0xff]
    %v304 = vld [vmem:[#allocation16 + $0x40] sm:$0xff]
    %v305 = vld [vmem:[#allocation16 + $0x48] sm:$0xff]
    %v306 = vld [vmem:[#allocation16 + $0x50] sm:$0xff]
    %v307 = vld [vmem:[#allocation16 + $0x58] sm:$0xff]
    %v308 = vld [vmem:[#allocation16 + $0x60] sm:$0xff]
    %v309 = vld [vmem:[#allocation16 + $0x68] sm:$0xff]
    %v310 = vld [vmem:[#allocation16 + $0x70] sm:$0xff]
    %v311 = vld [vmem:[#allocation16 + $0x78] sm:$0xff]
    %v312 = vld [vmem:[%s12] sm:$0x1]
    %v314 = vperm.slane %v295, 0
    %316 = vmatpush.msra.mxu0 %v294
    %317 = vmatpush.msra.mxu0 %v293
    %318 = vmatpush.msra.mxu0 %v292
    %319 = vmatpush.msra.mxu0 %v291
    %320 = vmatpush.msra.mxu0 %v290
    %321 = vmatpush.msra.mxu0 %v289
    %322 = vmatpush.msra.mxu0 %v288
    %323 = vmatpush.msra.mxu0 %v287
    %324 = vmatpush.msra.mxu0 %v286
    %325 = vmatpush.msra.mxu0 %v285
    %326 = vmatpush.msra.mxu0 %v284
    %327 = vmatpush.msra.mxu0 %v283
    %328 = vmatpush.msra.mxu0 %v282
    %329 = vmatpush.msra.mxu0 %v281
    %330 = vmatpush.msra.mxu0 %v280
    %331 = vmatpush.msra.mxu0 %v279
    %332 = vmatmul.f32.gmra.mxu0 %v179
    %v333 = vpop.f32.mrf.mxu0
    %v334 = vadd.f32 %v314, %v333
    %335 = vmatmul.f32.gmra.mxu0 %v180
    %v336 = vpop.f32.mrf.mxu0
    %v337 = vadd.f32 %v314, %v336
    %338 = vdwg.mxu0
    %vm339 = vcmp.gt.f32.partialorder %v334, 0.0
    %vm340 = vcmp.gt.f32.partialorder %v337, 0.0
    %v341 = vmin.f32 %v334, 0.0
    %v342 = vmin.f32 %v337, 0.0
    %v343 = vmul.f32 %v341, 1.442695
    %v344 = vpow.pop %v343
    %v345 = vmul.f32 %v342, 1.442695
    %v346 = vpow.pop %v345
    %v347 = vsub.f32 %v344, 1.0
    %v348 = vsub.f32 %v346, 1.0
    %v349 = vsel %vm339, %v334, %v347
    %v350 = vsel %vm340, %v337, %v348
    %v352 = vperm.slane %v312, 0
    %354 = vmatpush.msra.mxu0 %v311
    %355 = vmatpush.msra.mxu0 %v310
    %356 = vmatpush.msra.mxu0 %v309
    %357 = vmatpush.msra.mxu0 %v308
    %358 = vmatpush.msra.mxu0 %v307
    %359 = vmatpush.msra.mxu0 %v306
    %360 = vmatpush.msra.mxu0 %v305
    %361 = vmatpush.msra.mxu0 %v304
    %362 = vmatpush.msra.mxu0 %v303
    %363 = vmatpush.msra.mxu0 %v302
    %364 = vmatpush.msra.mxu0 %v301
    %365 = vmatpush.msra.mxu0 %v300
    %366 = vmatpush.msra.mxu0 %v299
    %367 = vmatpush.msra.mxu0 %v298
    %368 = vmatpush.msra.mxu0 %v297
    %369 = vmatpush.msra.mxu0 %v296
    %370 = vmatmul.f32.gmra.mxu0 %v349
    %v371 = vpop.f32.mrf.mxu0
    %v372 = vadd.f32 %v352, %v371
    %373 = vmatmul.f32.gmra.mxu0 %v350
    %v374 = vpop.f32.mrf.mxu0
    %v375 = vadd.f32 %v352, %v374
    %376 = vdwg.mxu0
    %v377 = vmul.f32 %v274, %v274
    %v378 = vmul.f32 %v277, %v277
    %379 = vadd.xlane.f32.xlu0 %v377
    %v380 = vpop.xlane.xlu0 %379
    %381 = vadd.xlane.f32.xlu0 %v378
    %v382 = vpop.xlane.xlu0 %381
    %v383 = vadd.f32 %v380, 1e-12
    %v384 = vadd.f32 %v382, 1e-12
    %v385 = vrsqrt.pop %v383
    %v386 = vmul.f32 %v385, %v383
    %v387 = vmul.f32 %v386, %v385
    %v388 = vmul.f32 0.5, %v387
    %v389 = vsub.f32 1.5, %v388
    %v390 = vmul.f32 %v385, %v389
    %vm391 = vweird.f32 %v383
    %vm392 = vweird.f32 %v385
    %vm393 = vmor %vm391, %vm392
    %v394 = vsel %vm393, %v385, %v390
    %v395 = vrsqrt.pop %v384
    %v396 = vmul.f32 %v395, %v384
    %v397 = vmul.f32 %v396, %v395
    %v398 = vmul.f32 0.5, %v397
    %v399 = vsub.f32 1.5, %v398
    %v400 = vmul.f32 %v395, %v399
    %vm401 = vweird.f32 %v384
    %vm402 = vweird.f32 %v395
    %vm403 = vmor %vm401, %vm402
    %v404 = vsel %vm403, %v395, %v400
    %v405 = vmul.f32 %v372, %v372
    %v406 = vmul.f32 %v375, %v375
    %407 = vadd.xlane.f32.xlu0 %v405
    %v408 = vpop.xlane.xlu0 %407
    %409 = vadd.xlane.f32.xlu0 %v406
    %v410 = vpop.xlane.xlu0 %409
    %v411 = vadd.f32 %v408, 1e-12
    %v412 = vadd.f32 %v410, 1e-12
    %v413 = vrsqrt.pop %v411
    %v414 = vmul.f32 %v413, %v411
    %v415 = vmul.f32 %v414, %v413
    %v416 = vmul.f32 0.5, %v415
    %v417 = vsub.f32 1.5, %v416
    %v418 = vmul.f32 %v413, %v417
    %vm419 = vweird.f32 %v411
    %vm420 = vweird.f32 %v413
    %vm421 = vmor %vm419, %vm420
    %v422 = vsel %vm421, %v413, %v418
    %v423 = vrsqrt.pop %v412
    %v424 = vmul.f32 %v423, %v412
    %v425 = vmul.f32 %v424, %v423
    %v426 = vmul.f32 0.5, %v425
    %v427 = vsub.f32 1.5, %v426
    %v428 = vmul.f32 %v423, %v427
    %vm429 = vweird.f32 %v412
    %vm430 = vweird.f32 %v423
    %vm431 = vmor %vm429, %vm430
    %v432 = vsel %vm431, %v423, %v428
    %v433 = vmul.f32 %v274, %v394
    %v434 = vmul.f32 %v277, %v404
    %v435 = vmul.f32 %v372, %v422
    %v436 = vmul.f32 %v375, %v432
    %437 = vmatpush.xpose.msra.mxu0 0.0
    %438 = vmatpush.xpose.msra.mxu0 0.0
    %439 = vmatpush.xpose.msra.mxu0 0.0
    %440 = vmatpush.xpose.msra.mxu0 0.0
    %441 = vmatpush.xpose.msra.mxu0 0.0
    %442 = vmatpush.xpose.msra.mxu0 0.0
    %443 = vmatpush.xpose.msra.mxu0 0.0
    %444 = vmatpush.xpose.msra.mxu0 0.0
    %445 = vmatpush.xpose.msra.mxu0 0.0
    %446 = vmatpush.xpose.msra.mxu0 0.0
    %447 = vmatpush.xpose.msra.mxu0 0.0
    %448 = vmatpush.xpose.msra.mxu0 0.0
    %449 = vmatpush.xpose.msra.mxu0 0.0
    %450 = vmatpush.xpose.msra.mxu0 0.0
    %451 = vmatpush.xpose.msra.mxu0 %v436
    %452 = vmatpush.xpose.msra.mxu0 %v435
    %453 = vmatmul.f32.gmra.mxu0 %v433
    %v454 = vpop.f32.mrf.mxu0
    %v455 = vadd.f32 0.0, %v454
    %456 = vmatmul.f32.gmra.mxu0 %v434
    %v457 = vpop.f32.mrf.mxu0
    %v458 = vadd.f32 0.0, %v457
    %459 = vdwg.mxu0
    %v460 = vmul.f32 %v455, 2.0
    %v461 = vmul.f32 %v458, 2.0
    %v462 = vmul.f32 %v460, 1.442695
    %v463 = vpow.pop %v462
    %v464 = vmul.f32 %v461, 1.442695
    %v465 = vpow.pop %v464
    %v466 = vld [vmem:[#allocation10] sm:$0xff]
    %v467 = vld [vmem:[#allocation10 + $0x8] sm:$0xff]
    %v468 = vmul.f32 %v463, %v466
    %v469 = vmul.f32 %v465, %v467
    %vm470 = vcmask 130048
    %v471 = vsel %vm470, %v468, 0.0
    %472 = vadd.xlane.f32.xlu0 %v471
    %v473 = vpop.xlane.xlu0 %472
    %v474 = vsel %vm470, %v469, 0.0
    %475 = vadd.xlane.f32.xlu0 %v474
    %v476 = vpop.xlane.xlu0 %475
    %v477 = vsel %vm470, %v463, 0.0
    %478 = vadd.xlane.f32.xlu0 %v477
    %v479 = vpop.xlane.xlu0 %478
    %v480 = vsel %vm470, %v465, 0.0
    %481 = vadd.xlane.f32.xlu0 %v480
    %v482 = vpop.xlane.xlu0 %481
    %v483 = vadd.f32 %v479, 1e-08
    %v484 = vadd.f32 %v482, 1e-08
    %v485 = vlog2.pop %v473
    %v486 = vmul.f32 %v485, 0.6931472
    %v487 = vlog2.pop %v476
    %v488 = vmul.f32 %v487, 0.6931472
    %v489 = vlog2.pop %v483
    %v490 = vmul.f32 %v489, 0.6931472
    %v491 = vlog2.pop %v484
    %v492 = vmul.f32 %v491, 0.6931472
    %v493 = vsub.f32 %v486, %v490
    %v494 = vsub.f32 %v488, %v492
    %vm495 = vcmask 7168
    %v496 = vsel %vm495, %v493, 0.0
    %v497 = vsel %vm495, %v494, 0.0
    %v498 = vadd.f32 %v496, %v497
    %499 = vadd.xlane.f32.xlu0 %v498
    %v500 = vpop.xlane.xlu0 %499
    %v501 = vrot.slane %v500, 4
    %v502 = vadd.f32 %v500, %v501
    %v503 = vrot.slane %v502, 2
    %v504 = vadd.f32 %v502, %v503
    %v505 = vrot.slane %v504, 1
    %v506 = vadd.f32 %v504, %v505
    %s507 = vtos %v506
    %v508 = vrcp.pop 16.0
    %v509 = vmul.f32 16.0, %v508
    %v510 = vsub.f32 1.0, %v509
    %v511 = vmul.f32 %v508, %v510
    %v512 = vadd.f32 %v508, %v511
    %vm513 = vweird.f32 %v508
    %v514 = vsel %vm513, %v508, %v512
    %s515 = vtos %v514
    %s516 = smul.f32 %s507, %s515
    %s517 = ssub.f32 0.0, %s516
    %v518 = vadd.f32 %v471, %v474
    %v519 = vrot.slane %v518, 4
    %v520 = vadd.f32 %v518, %v519
    %v521 = vrot.slane %v520, 2
    %v522 = vadd.f32 %v520, %v521
    %v523 = vrot.slane %v522, 1
    %v524 = vadd.f32 %v522, %v523
    %v525 = vadd.f32 %v477, %v480
    %v526 = vrot.slane %v525, 4
    %v527 = vadd.f32 %v525, %v526
    %v528 = vrot.slane %v527, 2
    %v529 = vadd.f32 %v527, %v528
    %v530 = vrot.slane %v529, 1
    %v531 = vadd.f32 %v529, %v530
    %v532 = vadd.f32 %v531, 1e-08
    %v533 = vlog2.pop %v524
    %v534 = vmul.f32 %v533, 0.6931472
    %v535 = vlog2.pop %v532
    %v536 = vmul.f32 %v535, 0.6931472
    %v537 = vsub.f32 %v534, %v536
    %vm538 = vcmask 122880
    %v539 = vsel %vm538, %v537, 0.0
    %540 = vadd.xlane.f32.xlu0 %v539
    %v541 = vpop.xlane.xlu0 %540
    %v542 = vrot.slane %v541, 4
    %v543 = vadd.f32 %v541, %v542
    %v544 = vrot.slane %v543, 2
    %v545 = vadd.f32 %v543, %v544
    %v546 = vrot.slane %v545, 1
    %v547 = vadd.f32 %v545, %v546
    %s548 = vtos %v547
    %v549 = vrcp.pop 16.0
    %v550 = vmul.f32 16.0, %v549
    %v551 = vsub.f32 1.0, %v550
    %v552 = vmul.f32 %v549, %v551
    %v553 = vadd.f32 %v549, %v552
    %vm554 = vweird.f32 %v549
    %v555 = vsel %vm554, %v549, %v553
    %s556 = vtos %v555
    %s557 = smul.f32 %s548, %s556
    %s558 = ssub.f32 0.0, %s557
    %s559 = sadd.f32 %s517, %s558
    %s560 = scalar_lea.smem [#allocation17], 0
    %561 = sst [smem:[%s560]] %s559
    // Predicated region
    $region90: #{tpu_custom_call.1} parent=1 // pred_check
      _
    $region91: #{tpu_custom_call.1} parent=1 // pred_check_branch
      %563 = sbr.rel (0) target = $region93
    $region92: #{tpu_custom_call.1} parent=1 // pred_region
      %565 = vsyncadd [#allocation4], 0
      %s567 = sshll.u32 %s13, 4
      %s568 = int_to_ptr.hbm [resolvable:$true] %s567
      %570 = dma.smem_to_hbm [#allocation17], 16, %s568, [#allocation4]
    $region93: #{tpu_custom_call.1} parent=1 // pred_fallthru
      _
    // Predicated region
    $region94: #{tpu_custom_call.1} parent=1 // pred_check
      _
    $region95: #{tpu_custom_call.1} parent=1 // pred_check_branch
      %572 = sbr.rel (0) target = $region97
    $region96: #{tpu_custom_call.1} parent=1 // pred_region
      %574 = dma.done [#allocation4], 16
    $region97: #{tpu_custom_call.1} parent=1 // pred_fallthru
      _
    %575 = sfence
    %576 = vsyncpa [#allocation3], 1
    %577 = vsyncpa [#allocation6], 1
    %578 = vsyncpa [#allocation9], 1
    %579 = vsyncpa [#allocation12], 1
    %580 = vsyncpa [#allocation15], 1
    %581 = vsyncpa [#allocation4], 1

</llo_original>
